<compile_context>
chip_gen: v7x
topology: tpu7x:2x2x1
jax: 0.10.0
libtpu: 0.0.40
codegen_flags: <defaults>
</compile_context>

<pallas_src>
import jax
import jax.numpy as jnp
from jax.experimental import pallas as pl
from jax.experimental.pallas import tpu as pltpu


OUT_CLASSES = 3      # logical number of classes (linear2 out_features)
OUT_PAD = 128        # lane-dense padded logits width
NEG_BIG = -1e30      # bias fill for padded logit lanes (exp underflows to 0)


def mlp_logsoftmax_kernel(x_ref, w1_ref, b1_ref, w2_ref, b2_ref, o_ref):
    # linear1 + relu (MXU dot, f32 accumulate)
    x = x_ref[...]
    h = jnp.dot(x, w1_ref[...], preferred_element_type=jnp.float32) + b1_ref[...]
    h = jnp.maximum(h, 0.0)
    # linear2 against the lane-dense padded RHS; padded columns get NEG_BIG bias
    z = jnp.dot(h, w2_ref[...], preferred_element_type=jnp.float32) + b2_ref[...]
    # numerically-stable log_softmax over the last axis
    # (padded lanes: exp(NEG_BIG - m) == 0, so they never affect the reduction)
    m = jnp.max(z, axis=-1, keepdims=True)
    e = jnp.exp(z - m)
    lse = m + jnp.log(jnp.sum(e, axis=-1, keepdims=True))
    # lane-dense (TB, 128) store -> unmasked vst
    o_ref[...] = z - lse


def _round_up(n, m):
    return ((n + m - 1) // m) * m


@jax.jit
def solution_model_forward(x, w1, b1, w2, b2):
    """x: (B, input_size, 2) f32. Weights in PyTorch nn.Linear layout:
       w1 (H, 2*input_size), b1 (H,), w2 (3, H), b2 (3,). Returns (B, 3) log-probs."""
    B = x.shape[0]
    D = x.shape[1] * x.shape[2]
    H = w1.shape[0]

    x2d = x.reshape(B, D).astype(jnp.float32)

    # Pre-transpose / pad weights under the same jit (fused, not per-call XLA ops).
    w1t = jnp.transpose(w1).astype(jnp.float32)                       # (D, H)
    b1r = b1.reshape(1, H).astype(jnp.float32)                        # (1, H)
    w2t = jnp.zeros((H, OUT_PAD), jnp.float32).at[:, :OUT_CLASSES].set(
        jnp.transpose(w2).astype(jnp.float32))                        # (H, 128)
    b2r = jnp.full((1, OUT_PAD), NEG_BIG, jnp.float32).at[0, :OUT_CLASSES].set(
        b2.astype(jnp.float32))                                       # (1, 128)

    # Batch tiling: amortize pallas_call / DMA fixed overhead over large row tiles.
    TB = min(512, _round_up(B, 8))            # multiple of 8 sublanes (f32)
    B_pad = pl.cdiv(B, TB) * TB
    if B_pad != B:
        x2d = jnp.pad(x2d, ((0, B_pad - B), (0, 0)))

    out = pl.pallas_call(
        mlp_logsoftmax_kernel,
        out_shape=jax.ShapeDtypeStruct((B_pad, OUT_PAD), jnp.float32),
        grid=(B_pad // TB,),
        in_specs=[
            pl.BlockSpec((TB, D), lambda i: (i, 0)),       # x row tile
            pl.BlockSpec((D, H), lambda i: (0, 0)),        # w1^T (grid-invariant)
            pl.BlockSpec((1, H), lambda i: (0, 0)),        # b1
            pl.BlockSpec((H, OUT_PAD), lambda i: (0, 0)),  # w2^T padded
            pl.BlockSpec((1, OUT_PAD), lambda i: (0, 0)),  # b2 padded
        ],
        out_specs=pl.BlockSpec((TB, OUT_PAD), lambda i: (i, 0)),
        compiler_params=pltpu.CompilerParams(
            dimension_semantics=("parallel",)),  # shard batch tiles across TCs on v7x
    )(x2d, w1t, b1r, w2t, b2r)

    return out[:B, :OUT_CLASSES]


def init_params(key, input_size, hidden_size=32, out_size=3):
    """Deterministic init mimicking nn.Linear's U(-1/sqrt(fan_in), 1/sqrt(fan_in))."""
    d = input_size * 2
    k1, k2, k3, k4 = jax.random.split(key, 4)
    bound1 = 1.0 / jnp.sqrt(d)
    bound2 = 1.0 / jnp.sqrt(hidden_size)
    w1 = jax.random.uniform(k1, (hidden_size, d), jnp.float32, -bound1, bound1)
    b1 = jax.random.uniform(k2, (hidden_size,), jnp.float32, -bound1, bound1)
    w2 = jax.random.uniform(k3, (out_size, hidden_size), jnp.float32, -bound2, bound2)
    b2 = jax.random.uniform(k4, (out_size,), jnp.float32, -bound2, bound2)
    return w1, b1, w2, b2


def _reference(x, w1, b1, w2, b2):
    x2d = x.reshape(x.shape[0], -1)
    h = jnp.maximum(x2d @ w1.T + b1, 0.0)
    z = h @ w2.T + b2
    return jax.nn.log_softmax(z, axis=1)


if __name__ == "__main__":
    key = jax.random.PRNGKey(0)
    kx, kp, kx2 = jax.random.split(key, 3)

    batch = 8
    input_size = 8  # "add" problem: two input_size-bit operands -> (B, input_size, 2)

    x = jax.random.bernoulli(kx, 0.5, (batch, input_size, 2)).astype(jnp.float32)
    w1, b1, w2, b2 = init_params(kp, input_size)

    out = solution_model_forward(x, w1, b1, w2, b2)
    out = jax.block_until_ready(out)
    ref = _reference(x, w1, b1, w2, b2)
    assert out.shape == (batch, 3)
    assert jnp.allclose(out, ref, atol=1e-5), "mismatch vs reference (small batch)"

    # Exercise the tiled/padded multi-step grid path (grid > 1, B % TB != 0).
    batch2 = 1030
    x2 = jax.random.bernoulli(kx2, 0.5, (batch2, input_size, 2)).astype(jnp.float32)
    out2 = jax.block_until_ready(solution_model_forward(x2, w1, b1, w2, b2))
    ref2 = _reference(x2, w1, b1, w2, b2)
    assert out2.shape == (batch2, 3)
    assert jnp.allclose(out2, ref2, atol=1e-5), "mismatch vs reference (tiled batch)"

    print("KERNEL_OK")
</pallas_src>

<mosaic_0001>
module attributes {stable_mosaic.version = 11 : i64} {
  func.func @mlp_logsoftmax_kernel(%arg0: i32, %arg1: memref<8x16xf32, #tpu.memory_space<vmem>>, %arg2: memref<16x32xf32, #tpu.memory_space<vmem>>, %arg3: memref<1x32xf32, #tpu.memory_space<vmem>>, %arg4: memref<32x128xf32, #tpu.memory_space<vmem>>, %arg5: memref<1x128xf32, #tpu.memory_space<vmem>>, %arg6: memref<8x128xf32, #tpu.memory_space<vmem>>) attributes {dimension_semantics = [#tpu.dimension_semantics<parallel>], iteration_bounds = array<i64: 1>, scalar_prefetch = 0 : i64, scratch_operands = 0 : i64, tpu.core_type = #tpu.core_type<tc>, window_params = [{transform_indices = @transform_0, window_bounds = array<i64: 8, 16>}, {pipeline_mode = #tpu.pipeline_mode<synchronous>, transform_indices = @transform_1, window_bounds = array<i64: 16, 32>}, {pipeline_mode = #tpu.pipeline_mode<synchronous>, transform_indices = @transform_2, window_bounds = array<i64: 1, 32>}, {pipeline_mode = #tpu.pipeline_mode<synchronous>, transform_indices = @transform_3, window_bounds = array<i64: 32, 128>}, {pipeline_mode = #tpu.pipeline_mode<synchronous>, transform_indices = @transform_4, window_bounds = array<i64: 1, 128>}, {transform_indices = @transform_5, window_bounds = array<i64: 8, 128>}]} {
    %c0 = arith.constant 0 : index
    %c0_0 = arith.constant 0 : index
    %0 = vector.load %arg1[%c0, %c0_0] : memref<8x16xf32, #tpu.memory_space<vmem>>, vector<8x16xf32>
    %c0_1 = arith.constant 0 : index
    %c0_2 = arith.constant 0 : index
    %1 = vector.load %arg2[%c0_1, %c0_2] : memref<16x32xf32, #tpu.memory_space<vmem>>, vector<16x32xf32>
    %cst = arith.constant dense<0.000000e+00> : vector<8x32xf32>
    %2 = tpu.matmul %0, %1, %cst {dimension_numbers = #tpu.dot_dimension_numbers<[1], [0], [0], [1], [0, 0, 1, 1], [], []>} : vector<8x16xf32>, vector<16x32xf32>, vector<8x32xf32> -> vector<8x32xf32>
    %c0_3 = arith.constant 0 : index
    %c0_4 = arith.constant 0 : index
    %3 = vector.load %arg3[%c0_3, %c0_4] : memref<1x32xf32, #tpu.memory_space<vmem>>, vector<1x32xf32>
    %4 = vector.broadcast %3 : vector<1x32xf32> to vector<8x32xf32>
    %5 = arith.addf %2, %4 : vector<8x32xf32>
    %cst_5 = arith.constant 0.000000e+00 : f32
    %6 = vector.broadcast %cst_5 : f32 to vector<8x32xf32>
    %7 = arith.maximumf %5, %6 : vector<8x32xf32>
    %c0_6 = arith.constant 0 : index
    %c0_7 = arith.constant 0 : index
    %8 = vector.load %arg4[%c0_6, %c0_7] : memref<32x128xf32, #tpu.memory_space<vmem>>, vector<32x128xf32>
    %cst_8 = arith.constant dense<0.000000e+00> : vector<8x128xf32>
    %9 = tpu.matmul %7, %8, %cst_8 {dimension_numbers = #tpu.dot_dimension_numbers<[1], [0], [0], [1], [0, 0, 1, 1], [], []>} : vector<8x32xf32>, vector<32x128xf32>, vector<8x128xf32> -> vector<8x128xf32>
    %c0_9 = arith.constant 0 : index
    %c0_10 = arith.constant 0 : index
    %10 = vector.load %arg5[%c0_9, %c0_10] : memref<1x128xf32, #tpu.memory_space<vmem>>, vector<1x128xf32>
    %11 = vector.broadcast %10 : vector<1x128xf32> to vector<8x128xf32>
    %12 = arith.addf %9, %11 : vector<8x128xf32>
    %cst_11 = arith.constant dense<0xFF800000> : vector<8xf32>
    %13 = vector.multi_reduction <maximumf>, %12, %cst_11 [1] : vector<8x128xf32> to vector<8xf32>
    %14 = vector.shape_cast %13 : vector<8xf32> to vector<8x1xf32>
    %15 = vector.broadcast %14 : vector<8x1xf32> to vector<8x128xf32>
    %16 = arith.subf %12, %15 : vector<8x128xf32>
    %17 = math.exp %16 : vector<8x128xf32>
    %cst_12 = arith.constant dense<0.000000e+00> : vector<8xf32>
    %18 = vector.multi_reduction <add>, %17, %cst_12 [1] : vector<8x128xf32> to vector<8xf32>
    %19 = vector.shape_cast %18 : vector<8xf32> to vector<8x1xf32>
    %20 = math.log %19 : vector<8x1xf32>
    %21 = arith.addf %14, %20 : vector<8x1xf32>
    %22 = vector.broadcast %21 : vector<8x1xf32> to vector<8x128xf32>
    %23 = arith.subf %12, %22 : vector<8x128xf32>
    %c0_13 = arith.constant 0 : index
    %c0_14 = arith.constant 0 : index
    %24 = vector.load %arg6[%c0_13, %c0_14] : memref<8x128xf32, #tpu.memory_space<vmem>>, vector<8x128xf32>
    tpu.vector_store %arg6[%c0_13, %c0_14], %23 {strides = array<i32>} : memref<8x128xf32, #tpu.memory_space<vmem>>, vector<8x128xf32>,
    return
  }
  func.func @transform_0(%arg0: i32) -> (i32, i32) {
    %c0_i32 = arith.constant 0 : i32
    %c0_i32_0 = arith.constant 0 : i32
    return %arg0, %c0_i32 : i32, i32
  }
  func.func @transform_1(%arg0: i32) -> (i32, i32) {
    %c0_i32 = arith.constant 0 : i32
    %c0_i32_0 = arith.constant 0 : i32
    %c0_i32_1 = arith.constant 0 : i32
    return %c0_i32, %c0_i32_0 : i32, i32
  }
  func.func @transform_2(%arg0: i32) -> (i32, i32) {
    %c0_i32 = arith.constant 0 : i32
    %c0_i32_0 = arith.constant 0 : i32
    %c0_i32_1 = arith.constant 0 : i32
    return %c0_i32, %c0_i32_0 : i32, i32
  }
  func.func @transform_3(%arg0: i32) -> (i32, i32) {
    %c0_i32 = arith.constant 0 : i32
    %c0_i32_0 = arith.constant 0 : i32
    %c0_i32_1 = arith.constant 0 : i32
    return %c0_i32, %c0_i32_0 : i32, i32
  }
  func.func @transform_4(%arg0: i32) -> (i32, i32) {
    %c0_i32 = arith.constant 0 : i32
    %c0_i32_0 = arith.constant 0 : i32
    %c0_i32_1 = arith.constant 0 : i32
    return %c0_i32, %c0_i32_0 : i32, i32
  }
  func.func @transform_5(%arg0: i32) -> (i32, i32) {
    %c0_i32 = arith.constant 0 : i32
    %c0_i32_0 = arith.constant 0 : i32
    return %arg0, %c0_i32 : i32, i32
  }
}

</mosaic_0001>

<llo_original>
// kernel: solution_model_forward.1
$region0: #{solution_model_forward.1}
  #allocation0 [shape = 'u32[]', space=smem, size = 0x4, offset = 0x4, fixed_abs, tag = 'smem constant byte address 0x4 - core index']
  #allocation1 [shape = 'u32[144,128]{1,0:T(1,128)}', space=vmem, size = 0x12000, scoped, tag = 'internal scratch']
  %s0 = inlined_call_operand.vmem [shape: f32[8,16], index: 0, kind: input, shape index: {}]
  %s1 = inlined_call_operand.vmem [shape: f32[16,32], index: 1, kind: input, shape index: {}]
  %s2 = inlined_call_operand.vmem [shape: f32[1,32], index: 2, kind: input, shape index: {}]
  %s3 = inlined_call_operand.vmem [shape: f32[32,128], index: 3, kind: input, shape index: {}]
  %s4 = inlined_call_operand.vmem [shape: f32[1,128], index: 4, kind: input, shape index: {}]
  %s5 = inlined_call_operand.vmem [shape: f32[8,128], index: 5, kind: output, shape index: {}]
  %s6 = sld [smem:[#allocation0]]
  $region30: #{solution_model_forward.1} parent=0
    _
  %s8 = ssub.s32 1, %s6
  %s9 = scalar_select 0, %s8, %s6
  // Predicated region
  $region2: #{solution_model_forward.1} parent=0 // pred_check
    _
  $region3: #{solution_model_forward.1} parent=0 // pred_check_branch
    %11 = sbr.rel (0) target = $region5
  $region4: #{solution_model_forward.1} parent=0 // pred_region
    _
  $region5: #{solution_model_forward.1} parent=0 // pred_fallthru
    _
  // Predicated region
  $region6: #{solution_model_forward.1} parent=0 // pred_check
    _
  $region7: #{solution_model_forward.1} parent=0 // pred_check_branch
    %13 = sbr.rel (0) target = $region9
  $region8: #{solution_model_forward.1} parent=0 // pred_region
    _
  $region9: #{solution_model_forward.1} parent=0 // pred_fallthru
    _
  // Predicated region
  $region10: #{solution_model_forward.1} parent=0 // pred_check
    _
  $region11: #{solution_model_forward.1} parent=0 // pred_check_branch
    %15 = sbr.rel (0) target = $region13
  $region12: #{solution_model_forward.1} parent=0 // pred_region
    _
  $region13: #{solution_model_forward.1} parent=0 // pred_fallthru
    _
  // Predicated region
  $region14: #{solution_model_forward.1} parent=0 // pred_check
    _
  $region15: #{solution_model_forward.1} parent=0 // pred_check_branch
    %17 = sbr.rel (0) target = $region17
  $region16: #{solution_model_forward.1} parent=0 // pred_region
    _
  $region17: #{solution_model_forward.1} parent=0 // pred_fallthru
    _
  // Predicated region
  $region18: #{solution_model_forward.1} parent=0 // pred_check
    _
  $region19: #{solution_model_forward.1} parent=0 // pred_check_branch
    %19 = sbr.rel (0) target = $region21
  $region20: #{solution_model_forward.1} parent=0 // pred_region
    _
  $region21: #{solution_model_forward.1} parent=0 // pred_fallthru
    _
  %v20 = vld [vmem:[%s0] sm:$0xff]
  %v21 = vld [vmem:[%s1] sm:$0xff]
  %v22 = vld [vmem:[%s1 + $0x8] sm:$0xff]
  %v23 = vld [vmem:[%s2] sm:$0x1]
  %v25 = vlaneseq
  %v26 = vshrl.u32 %v25, 7
  %v27 = vsub.s32 0, %v26
  %v28 = vrot.slane %v23, %v27
  %vm30 = vcmask 130048
  %v32 = vsel %vm30, %v20, 0
  %34 = vmatprep.subr.mxu0 0.0
  %35 = vmatpush1.msra.mxu0 %v21
  %36 = vmatprep.subr.mxu0 0.0
  %37 = vmatpush1.msra.mxu0 %v22
  %38 = vmatprep.subr.mxu0 0.0
  %39 = vmatpush1.msra.mxu0 0.0
  %40 = vmatprep.subr.mxu0 0.0
  %41 = vmatpush1.msra.mxu0 0.0
  %42 = vmatprep.subr.mxu0 0.0
  %43 = vmatpush1.msra.mxu0 0.0
  %44 = vmatprep.subr.mxu0 0.0
  %45 = vmatpush1.msra.mxu0 0.0
  %46 = vmatprep.subr.mxu0 0.0
  %47 = vmatpush1.msra.mxu0 0.0
  %48 = vmatprep.subr.mxu0 0.0
  %49 = vmatpush1.msra.mxu0 0.0
  %50 = vmatprep.subr.mxu0 0.0
  %51 = vmatpush1.msra.mxu0 0.0
  %52 = vmatprep.subr.mxu0 0.0
  %53 = vmatpush1.msra.mxu0 0.0
  %54 = vmatprep.subr.mxu0 0.0
  %55 = vmatpush1.msra.mxu0 0.0
  %56 = vmatprep.subr.mxu0 0.0
  %57 = vmatpush1.msra.mxu0 0.0
  %58 = vmatprep.subr.mxu0 0.0
  %59 = vmatpush1.msra.mxu0 0.0
  %60 = vmatprep.subr.mxu0 0.0
  %61 = vmatpush1.msra.mxu0 0.0
  %62 = vmatprep.subr.mxu0 0.0
  %63 = vmatpush1.msra.mxu0 0.0
  %64 = vmatprep.subr.mxu0 0.0
  %65 = vmatpush1.msra.mxu0 0.0
  %66 = vmatprep.subr.mxu0 0.0
  %67 = vmatpush1.msra.mxu0 0.0
  %68 = vmatprep.subr.mxu0 0.0
  %69 = vmatpush1.msra.mxu0 0.0
  %70 = vmatprep.subr.mxu0 0.0
  %71 = vmatpush1.msra.mxu0 0.0
  %72 = vmatprep.subr.mxu0 0.0
  %73 = vmatpush1.msra.mxu0 0.0
  %74 = vmatprep.subr.mxu0 0.0
  %75 = vmatpush1.msra.mxu0 0.0
  %76 = vmatprep.subr.mxu0 0.0
  %77 = vmatpush1.msra.mxu0 0.0
  %78 = vmatprep.subr.mxu0 0.0
  %79 = vmatpush1.msra.mxu0 0.0
  %80 = vmatprep.subr.mxu0 0.0
  %81 = vmatpush1.msra.mxu0 0.0
  %82 = vmatprep.subr.mxu0 0.0
  %83 = vmatpush1.msra.mxu0 0.0
  %84 = vmatprep.subr.mxu0 0.0
  %85 = vmatpush1.msra.mxu0 0.0
  %86 = vmatprep.subr.mxu0 0.0
  %87 = vmatpush1.msra.mxu0 0.0
  %88 = vmatprep.subr.mxu0 0.0
  %89 = vmatpush1.msra.mxu0 0.0
  %90 = vmatprep.subr.mxu0 0.0
  %91 = vmatpush1.msra.mxu0 0.0
  %92 = vmatprep.subr.mxu0 0.0
  %93 = vmatpush1.msra.mxu0 0.0
  %94 = vmatprep.subr.mxu0 0.0
  %95 = vmatpush1.msra.mxu0 0.0
  %96 = vmatprep.subr.mxu0 0.0
  %97 = vmatpush1.msra.mxu0 0.0
  %98 = vmatprep.mubr.f32.mxu0 0.0
  %99 = vmatmul.mubr.f32.gmra.mrb[0].mxu0 %v32
  %v100 = vpop.f32.mrb[0].mxu0
  %v101 = vadd.f32 %v28, %v100
  %v102 = vpop.f32.mrb[0].mxu0
  %103 = vdwg.mxu0
  %v104 = vmax.f32 %v101, 0.0
  %v105 = vld [vmem:[%s3] sm:$0xff]
  %v106 = vld [vmem:[%s3 + $0x8] sm:$0xff]
  %v107 = vld [vmem:[%s3 + $0x10] sm:$0xff]
  %v108 = vld [vmem:[%s3 + $0x18] sm:$0xff]
  %v109 = vld [vmem:[%s4] sm:$0x1]
  %v111 = vlaneseq
  %v112 = vshrl.u32 %v111, 7
  %v113 = vsub.s32 0, %v112
  %v114 = vrot.slane %v109, %v113
  %vm116 = vcmask 261120
  %v118 = vsel %vm116, %v104, 0
  %120 = vmatprep.subr.mxu0 0.0
  %121 = vmatpush1.msra.mxu0 %v105
  %122 = vmatprep.subr.mxu0 0.0
  %123 = vmatpush1.msra.mxu0 %v106
  %124 = vmatprep.subr.mxu0 0.0
  %125 = vmatpush1.msra.mxu0 %v107
  %126 = vmatprep.subr.mxu0 0.0
  %127 = vmatpush1.msra.mxu0 %v108
  %128 = vmatprep.subr.mxu0 0.0
  %129 = vmatpush1.msra.mxu0 0.0
  %130 = vmatprep.subr.mxu0 0.0
  %131 = vmatpush1.msra.mxu0 0.0
  %132 = vmatprep.subr.mxu0 0.0
  %133 = vmatpush1.msra.mxu0 0.0
  %134 = vmatprep.subr.mxu0 0.0
  %135 = vmatpush1.msra.mxu0 0.0
  %136 = vmatprep.subr.mxu0 0.0
  %137 = vmatpush1.msra.mxu0 0.0
  %138 = vmatprep.subr.mxu0 0.0
  %139 = vmatpush1.msra.mxu0 0.0
  %140 = vmatprep.subr.mxu0 0.0
  %141 = vmatpush1.msra.mxu0 0.0
  %142 = vmatprep.subr.mxu0 0.0
  %143 = vmatpush1.msra.mxu0 0.0
  %144 = vmatprep.subr.mxu0 0.0
  %145 = vmatpush1.msra.mxu0 0.0
  %146 = vmatprep.subr.mxu0 0.0
  %147 = vmatpush1.msra.mxu0 0.0
  %148 = vmatprep.subr.mxu0 0.0
  %149 = vmatpush1.msra.mxu0 0.0
  %150 = vmatprep.subr.mxu0 0.0
  %151 = vmatpush1.msra.mxu0 0.0
  %152 = vmatprep.subr.mxu0 0.0
  %153 = vmatpush1.msra.mxu0 0.0
  %154 = vmatprep.subr.mxu0 0.0
  %155 = vmatpush1.msra.mxu0 0.0
  %156 = vmatprep.subr.mxu0 0.0
  %157 = vmatpush1.msra.mxu0 0.0
  %158 = vmatprep.subr.mxu0 0.0
  %159 = vmatpush1.msra.mxu0 0.0
  %160 = vmatprep.subr.mxu0 0.0
  %161 = vmatpush1.msra.mxu0 0.0
  %162 = vmatprep.subr.mxu0 0.0
  %163 = vmatpush1.msra.mxu0 0.0
  %164 = vmatprep.subr.mxu0 0.0
  %165 = vmatpush1.msra.mxu0 0.0
  %166 = vmatprep.subr.mxu0 0.0
  %167 = vmatpush1.msra.mxu0 0.0
  %168 = vmatprep.subr.mxu0 0.0
  %169 = vmatpush1.msra.mxu0 0.0
  %170 = vmatprep.subr.mxu0 0.0
  %171 = vmatpush1.msra.mxu0 0.0
  %172 = vmatprep.subr.mxu0 0.0
  %173 = vmatpush1.msra.mxu0 0.0
  %174 = vmatprep.subr.mxu0 0.0
  %175 = vmatpush1.msra.mxu0 0.0
  %176 = vmatprep.subr.mxu0 0.0
  %177 = vmatpush1.msra.mxu0 0.0
  %178 = vmatprep.subr.mxu0 0.0
  %179 = vmatpush1.msra.mxu0 0.0
  %180 = vmatprep.subr.mxu0 0.0
  %181 = vmatpush1.msra.mxu0 0.0
  %182 = vmatprep.subr.mxu0 0.0
  %183 = vmatpush1.msra.mxu0 0.0
  %184 = vmatprep.mubr.f32.mxu0 0.0
  %185 = vmatmul.mubr.f32.gmra.mrb[0].mxu0 %v118
  %v186 = vpop.f32.mrb[0].mxu0
  %v187 = vadd.f32 %v114, %v186
  %v188 = vpop.f32.mrb[0].mxu0
  %189 = vdwg.mxu0
  %190 = vmax.xlane.f32.xlu0 %v187
  %v191 = vpop.xlane.xlu0 %190
  %v192 = vsub.f32 %v187, %v191
  %v193 = vmul.f32 %v192, 1.442695
  %v194 = vpow.pop %v193
  %195 = vadd.xlane.f32.xlu0 %v194
  %v196 = vpop.xlane.xlu0 %195
  %v197 = vlog2.pop %v196
  %v198 = vmul.f32 %v197, 0.6931472
  %v199 = vadd.f32 %v191, %v198
  %v200 = vsub.f32 %v187, %v199
  %201 = vst [vmem:[%s5] sm:$0xff] %v200
  // Predicated region
  $region22: #{solution_model_forward.1} parent=0 // pred_check
    _
  $region23: #{solution_model_forward.1} parent=0 // pred_check_branch
    %203 = sbr.rel (0) target = $region25
  $region24: #{solution_model_forward.1} parent=0 // pred_region
    _
  $region25: #{solution_model_forward.1} parent=0 // pred_fallthru
    _
  // Predicated region
  $region26: #{solution_model_forward.1} parent=0 // pred_check
    _
  $region27: #{solution_model_forward.1} parent=0 // pred_check_branch
    %205 = sbr.rel (0) target = $region29
  $region28: #{solution_model_forward.1} parent=0 // pred_region
    _
  $region29: #{solution_model_forward.1} parent=0 // pred_fallthru
    _

</llo_original>
